<compile_context>
chip_gen: v6e
topology: v6e:2x2x1
jax: 0.10.0
libtpu: 0.0.40
codegen_flags: <defaults>
</compile_context>

<pallas_src>
import jax
import jax.numpy as jnp
from jax.experimental import pallas as pl
from jax.experimental.pallas import tpu as pltpu


def _round_up(x, m):
    return ((x + m - 1) // m) * m


def _vmem_use_bytes(tm, C, itemsize):
    """Rough per-call VMEM footprint used to budget the row tile."""
    return (4 * tm * C * itemsize      # 2 activation inputs, double-buffered
            + tm * C * 4               # f32 hidden intermediate h
            + 2 * tm * 4               # lane-dense f32 output, double-buffered
            + 4 * C * C * itemsize     # square weights (double-buffered)
            + 2 * 3 * C * 4)           # packed constants


def _choose_tm(N, C, itemsize, target_step_bytes, vmem_budget_bytes):
    # Aim for `target_step_bytes` of activation traffic per grid step
    # (per-step activation bytes = 2 * tm * C * itemsize).
    tm = max(128, target_step_bytes // (2 * C * itemsize))

    # Clamp against the VMEM budget (safe on v7x's 64 MiB physical VMEM).
    while tm > 128 and _vmem_use_bytes(tm, C, itemsize) > vmem_budget_bytes:
        tm //= 2

    # Cap at the (128-rounded) row count; multiples of 128 keep the (1,1,tm)
    # output block lane-dense (unmasked vst) and satisfy (8,128) tiling.
    tm = min(tm, _round_up(N, 128))
    tm = max(128, (tm // 128) * 128)
    return tm


def _link_predictor_kernel(zs_ref, zd_ref, ws_ref, wd_ref, c_ref, o_ref):
    # zs/zd: (tm, C) compute dtype; ws/wd: (C, C) pre-transposed;
    # c: (3, C) f32 packed constants [b_src+b_dst ; W_final ; b_final bcast];
    # o: (1, 1, tm) lane-dense f32.
    h = jnp.dot(zs_ref[...], ws_ref[...], preferred_element_type=jnp.float32)
    h = h + jnp.dot(zd_ref[...], wd_ref[...], preferred_element_type=jnp.float32)
    h = jnp.maximum(h + c_ref[0:1, :], 0.0)               # fused bias + ReLU (f32)

    # Final projection produced directly lane-major:
    # (1, C) x (tm, C) contracting C  ->  (1, tm)
    # (If Mosaic were to materialize a (C,tm) transpose of h here, the masked
    #  (tm,1) column-store fallback costs <2% of per-step input bytes.)
    wf = c_ref[1:2, :]
    out = jax.lax.dot_general(
        wf, h,
        dimension_numbers=(((1,), (1,)), ((), ())),
        preferred_element_type=jnp.float32)
    out = out + c_ref[2:3, 0:1]                           # + b_final (broadcast)
    o_ref[...] = out.reshape(o_ref.shape).astype(o_ref.dtype)


def link_predictor(z_src, z_dst, params, *, tm=None,
                   compute_dtype=jnp.bfloat16,
                   target_step_bytes=8 << 20,
                   vmem_budget_bytes=40 << 20):
    """Pallas implementation of LinkPredictor.forward.

    z_src, z_dst : [N, C] activations.
    params       : PyTorch-convention weights:
                   w_src [C, C], b_src [C], w_dst [C, C], b_dst [C],
                   w_final [1, C], b_final [1]
    compute_dtype: dtype for activations + square weights fed to the MXU
                   (f32 accumulation always).  bf16 default halves the
                   dominant HBM stream; pass bf16 inputs directly to avoid the
                   wrapper-side cast.  Use jnp.float32 for exact semantics.
    returns      : [N, 1] float32
    """
    N, C = z_src.shape
    assert z_dst.shape == (N, C)

    compute_dtype = jnp.dtype(compute_dtype if compute_dtype is not None
                              else z_src.dtype)
    itemsize = compute_dtype.itemsize

    if tm is None:
        tm = _choose_tm(N, C, itemsize, target_step_bytes, vmem_budget_bytes)
    else:
        tm = max(128, (min(tm, _round_up(N, 128)) // 128) * 128)
    grid_n = pl.cdiv(N, tm)           # boundary block partially valid; no pad

    # Glue: pre-transpose square weights (Linear computes x @ W^T); pack the
    # tiny constants into one (3, C) f32 stream:
    #   row 0: b_src + b_dst   row 1: W_final   row 2: b_final (broadcast)
    ws_t = params["w_src"].T.astype(compute_dtype)        # (C, C)
    wd_t = params["w_dst"].T.astype(compute_dtype)        # (C, C)
    consts = jnp.concatenate([
        (params["b_src"] + params["b_dst"]).reshape(1, C).astype(jnp.float32),
        params["w_final"].reshape(1, C).astype(jnp.float32),
        jnp.broadcast_to(params["b_final"].reshape(1, 1).astype(jnp.float32),
                         (1, C)),
    ], axis=0)                                            # (3, C)

    zs = z_src.astype(compute_dtype)
    zd = z_dst.astype(compute_dtype)

    cost = pl.CostEstimate(
        flops=4 * N * C * C + 4 * N * C + N,
        transcendentals=0,
        bytes_accessed=(2 * N * C * itemsize               # activations in
                        + 2 * C * C * itemsize             # square weights
                        + 3 * C * 4                        # packed constants
                        + N * 4),                          # output
    )

    row_spec = pl.BlockSpec((tm, C), lambda i: (i, 0))

    out = pl.pallas_call(
        _link_predictor_kernel,
        out_shape=jax.ShapeDtypeStruct((grid_n, 1, tm), jnp.float32),
        grid_spec=pltpu.PrefetchScalarGridSpec(
            num_scalar_prefetch=0,
            grid=(grid_n,),
            in_specs=[
                row_spec,                                  # z_src row tile
                row_spec,                                  # z_dst row tile
                pl.BlockSpec((C, C), lambda i: (0, 0)),    # W_src^T (resident)
                pl.BlockSpec((C, C), lambda i: (0, 0)),    # W_dst^T (resident)
                pl.BlockSpec((3, C), lambda i: (0, 0)),    # packed constants
            ],
            out_specs=pl.BlockSpec((1, 1, tm), lambda i: (i, 0, 0)),
        ),
        compiler_params=pltpu.CompilerParams(
            # On v7x, CORE_PARALLEL / core_map could shard rows across the two
            # TensorCores, but this kernel is HBM-bound so gains are limited.
            dimension_semantics=("parallel",),
            vmem_limit_bytes=48 << 20,    # allow big tiles; safe on 64 MiB v7x
        ),
        cost_estimate=cost,
    )(zs, zd, ws_t, wd_t, consts)

    # Lane-dense (grid_n, 1, tm) -> (N, 1); boundary-block garbage rows sliced off.
    return out.reshape(grid_n * tm, 1)[:N]


def _init_params(key, in_channels):
    """Deterministic synthetic parameters matching nn.Linear shapes."""
    ks = jax.random.split(key, 6)
    bound = 1.0 / (in_channels ** 0.5)
    u = lambda k, shape: jax.random.uniform(k, shape, jnp.float32, -bound, bound)
    return {
        "w_src":   u(ks[0], (in_channels, in_channels)),
        "b_src":   u(ks[1], (in_channels,)),
        "w_dst":   u(ks[2], (in_channels, in_channels)),
        "b_dst":   u(ks[3], (in_channels,)),
        "w_final": u(ks[4], (1, in_channels)),
        "b_final": u(ks[5], (1,)),
    }


def _reference(z_src, z_dst, p):
    h = z_src @ p["w_src"].T + p["b_src"] + z_dst @ p["w_dst"].T + p["b_dst"]
    h = jnp.maximum(h, 0.0)
    return h @ p["w_final"].T + p["b_final"]


if __name__ == "__main__":
    key = jax.random.PRNGKey(0)
    k_src, k_dst, k_par = jax.random.split(key, 3)

    N, C = 128, 32                                    # small test shapes
    z_src = jax.random.normal(k_src, (N, C), jnp.float32)
    z_dst = jax.random.normal(k_dst, (N, C), jnp.float32)
    params = _init_params(k_par, C)

    ref = _reference(z_src, z_dst, params)

    # Exact-semantics path (f32 compute) — tight tolerance.
    out_f32 = jax.block_until_ready(
        link_predictor(z_src, z_dst, params, compute_dtype=jnp.float32))
    assert out_f32.shape == (N, 1)
    assert jnp.allclose(out_f32, ref, atol=1e-5, rtol=1e-5), "f32 mismatch"

    # Default fast path (bf16 activations/weights, f32 accumulation) —
    # loose tolerance, expected due to bf16 quantization of inputs/weights.
    out_bf16 = jax.block_until_ready(link_predictor(z_src, z_dst, params))
    assert out_bf16.shape == (N, 1)
    assert jnp.allclose(out_bf16, ref, atol=1e-1, rtol=5e-2), "bf16 mismatch"

    # Non-128-aligned N exercises the cdiv boundary-block path (no wrapper pad).
    N2 = 100
    out2 = jax.block_until_ready(
        link_predictor(z_src[:N2], z_dst[:N2], params,
                       compute_dtype=jnp.float32))
    ref2 = _reference(z_src[:N2], z_dst[:N2], params)
    assert out2.shape == (N2, 1)
    assert jnp.allclose(out2, ref2, atol=1e-5, rtol=1e-5), "boundary mismatch"

    print("KERNEL_OK")
</pallas_src>

<mosaic_0001>
module attributes {stable_mosaic.version = 11 : i64} {
  func.func @_link_predictor_kernel(%arg0: i32, %arg1: memref<128x32xf32, #tpu.memory_space<vmem>>, %arg2: memref<128x32xf32, #tpu.memory_space<vmem>>, %arg3: memref<32x32xf32, #tpu.memory_space<vmem>>, %arg4: memref<32x32xf32, #tpu.memory_space<vmem>>, %arg5: memref<3x32xf32, #tpu.memory_space<vmem>>, %arg6: memref<1x1x128xf32, #tpu.memory_space<vmem>>) attributes {dimension_semantics = [#tpu.dimension_semantics<parallel>], iteration_bounds = array<i64: 1>, scalar_prefetch = 0 : i64, scratch_operands = 0 : i64, tpu.core_type = #tpu.core_type<tc>, window_params = [{transform_indices = @transform_0, window_bounds = array<i64: 128, 32>}, {transform_indices = @transform_1, window_bounds = array<i64: 128, 32>}, {pipeline_mode = #tpu.pipeline_mode<synchronous>, transform_indices = @transform_2, window_bounds = array<i64: 32, 32>}, {pipeline_mode = #tpu.pipeline_mode<synchronous>, transform_indices = @transform_3, window_bounds = array<i64: 32, 32>}, {pipeline_mode = #tpu.pipeline_mode<synchronous>, transform_indices = @transform_4, window_bounds = array<i64: 3, 32>}, {transform_indices = @transform_5, window_bounds = array<i64: 1, 1, 128>}]} {
    %c0 = arith.constant 0 : index
    %c0_0 = arith.constant 0 : index
    %0 = vector.load %arg1[%c0, %c0_0] : memref<128x32xf32, #tpu.memory_space<vmem>>, vector<128x32xf32>
    %c0_1 = arith.constant 0 : index
    %c0_2 = arith.constant 0 : index
    %1 = vector.load %arg3[%c0_1, %c0_2] : memref<32x32xf32, #tpu.memory_space<vmem>>, vector<32x32xf32>
    %cst = arith.constant dense<0.000000e+00> : vector<128x32xf32>
    %2 = tpu.matmul %0, %1, %cst {dimension_numbers = #tpu.dot_dimension_numbers<[1], [0], [0], [1], [0, 0, 1, 1], [], []>} : vector<128x32xf32>, vector<32x32xf32>, vector<128x32xf32> -> vector<128x32xf32>
    %c0_3 = arith.constant 0 : index
    %c0_4 = arith.constant 0 : index
    %3 = vector.load %arg2[%c0_3, %c0_4] : memref<128x32xf32, #tpu.memory_space<vmem>>, vector<128x32xf32>
    %c0_5 = arith.constant 0 : index
    %c0_6 = arith.constant 0 : index
    %4 = vector.load %arg4[%c0_5, %c0_6] : memref<32x32xf32, #tpu.memory_space<vmem>>, vector<32x32xf32>
    %cst_7 = arith.constant dense<0.000000e+00> : vector<128x32xf32>
    %5 = tpu.matmul %3, %4, %cst_7 {dimension_numbers = #tpu.dot_dimension_numbers<[1], [0], [0], [1], [0, 0, 1, 1], [], []>} : vector<128x32xf32>, vector<32x32xf32>, vector<128x32xf32> -> vector<128x32xf32>
    %6 = arith.addf %2, %5 : vector<128x32xf32>
    %c0_8 = arith.constant 0 : index
    %c0_9 = arith.constant 0 : index
    %7 = vector.load %arg5[%c0_8, %c0_9] : memref<3x32xf32, #tpu.memory_space<vmem>>, vector<1x32xf32>
    %8 = vector.broadcast %7 : vector<1x32xf32> to vector<128x32xf32>
    %9 = arith.addf %6, %8 : vector<128x32xf32>
    %cst_10 = arith.constant 0.000000e+00 : f32
    %10 = vector.broadcast %cst_10 : f32 to vector<128x32xf32>
    %11 = arith.maximumf %9, %10 : vector<128x32xf32>
    %c1 = arith.constant 1 : index
    %c0_11 = arith.constant 0 : index
    %12 = vector.load %arg5[%c1, %c0_11] : memref<3x32xf32, #tpu.memory_space<vmem>>, vector<1x32xf32>
    %cst_12 = arith.constant dense<0.000000e+00> : vector<1x128xf32>
    %13 = tpu.matmul %12, %11, %cst_12 {dimension_numbers = #tpu.dot_dimension_numbers<[1], [1], [0], [0], [0, 0, 1, 0], [], []>} : vector<1x32xf32>, vector<128x32xf32>, vector<1x128xf32> -> vector<1x128xf32>
    %c2 = arith.constant 2 : index
    %c0_13 = arith.constant 0 : index
    %14 = vector.load %arg5[%c2, %c0_13] : memref<3x32xf32, #tpu.memory_space<vmem>>, vector<1x1xf32>
    %15 = vector.broadcast %14 : vector<1x1xf32> to vector<1x128xf32>
    %16 = arith.addf %13, %15 : vector<1x128xf32>
    %17 = vector.shape_cast %16 : vector<1x128xf32> to vector<1x1x128xf32>
    %c0_14 = arith.constant 0 : index
    %c0_15 = arith.constant 0 : index
    %c0_16 = arith.constant 0 : index
    %18 = vector.load %arg6[%c0_14, %c0_15, %c0_16] : memref<1x1x128xf32, #tpu.memory_space<vmem>>, vector<1x1x128xf32>
    tpu.vector_store %arg6[%c0_14, %c0_15, %c0_16], %17 {strides = array<i32>} : memref<1x1x128xf32, #tpu.memory_space<vmem>>, vector<1x1x128xf32>,
    return
  }
  func.func @transform_0(%arg0: i32) -> (i32, i32) {
    %c0_i32 = arith.constant 0 : i32
    %c0_i32_0 = arith.constant 0 : i32
    return %arg0, %c0_i32 : i32, i32
  }
  func.func @transform_1(%arg0: i32) -> (i32, i32) {
    %c0_i32 = arith.constant 0 : i32
    %c0_i32_0 = arith.constant 0 : i32
    return %arg0, %c0_i32 : i32, i32
  }
  func.func @transform_2(%arg0: i32) -> (i32, i32) {
    %c0_i32 = arith.constant 0 : i32
    %c0_i32_0 = arith.constant 0 : i32
    %c0_i32_1 = arith.constant 0 : i32
    return %c0_i32, %c0_i32_0 : i32, i32
  }
  func.func @transform_3(%arg0: i32) -> (i32, i32) {
    %c0_i32 = arith.constant 0 : i32
    %c0_i32_0 = arith.constant 0 : i32
    %c0_i32_1 = arith.constant 0 : i32
    return %c0_i32, %c0_i32_0 : i32, i32
  }
  func.func @transform_4(%arg0: i32) -> (i32, i32) {
    %c0_i32 = arith.constant 0 : i32
    %c0_i32_0 = arith.constant 0 : i32
    %c0_i32_1 = arith.constant 0 : i32
    return %c0_i32, %c0_i32_0 : i32, i32
  }
  func.func @transform_5(%arg0: i32) -> (i32, i32, i32) {
    %c0_i32 = arith.constant 0 : i32
    %c0_i32_0 = arith.constant 0 : i32
    %c0_i32_1 = arith.constant 0 : i32
    return %arg0, %c0_i32, %c0_i32_0 : i32, i32, i32
  }
}

</mosaic_0001>

<llo_original>
// kernel: tpu_custom_call.1
$region0: #{tpu_custom_call.1}
  #allocation0 [shape = 'u32[]', space=smem, size = 0x4, offset = 0x4, fixed_abs, tag = 'smem constant byte address 0x4 - core index']
  #allocation1 [shape = 'u32[144,128]{1,0:T(1,128)}', space=vmem, size = 0x12000, scoped, tag = 'internal scratch']
  %s0 = inlined_call_operand.vmem [shape: f32[128,32], index: 0, kind: input, shape index: {}]
  %s1 = inlined_call_operand.vmem [shape: f32[128,32], index: 1, kind: input, shape index: {}]
  %s2 = inlined_call_operand.vmem [shape: f32[32,32], index: 2, kind: input, shape index: {}]
  %s3 = inlined_call_operand.vmem [shape: f32[32,32], index: 3, kind: input, shape index: {}]
  %s4 = inlined_call_operand.vmem [shape: f32[3,32], index: 4, kind: input, shape index: {}]
  %s5 = inlined_call_operand.hbm [shape: f32[1,1,128], index: 5, kind: output, shape index: {}]
  %s6 = sld [smem:[#allocation0]]
  $region30: #{tpu_custom_call.1} parent=0
    _
  %s8 = ssub.s32 1, %s6
  %s9 = scalar_select 0, %s8, %s6
  $region1: #{tpu_custom_call.1} parent=0
    #allocation2 [shape = 'u8[512]{0}', space=vmem, size = 0x400, scoped, tag = 'output window, operand 0, single buffered']
    #allocation3 [shape = 's32[1]{0}', space=sflag, size = 0x4, scoped, tag = 'scoped memory for tpu_custom_call.1']
    %10 = vsyncpa [#allocation3], 0
    // Predicated region
    $region2: #{tpu_custom_call.1} parent=1 // pred_check
      _
    $region3: #{tpu_custom_call.1} parent=1 // pred_check_branch
      %12 = sbr.rel (0) target = $region5
    $region4: #{tpu_custom_call.1} parent=1 // pred_region
      _
    $region5: #{tpu_custom_call.1} parent=1 // pred_fallthru
      _
    // Predicated region
    $region6: #{tpu_custom_call.1} parent=1 // pred_check
      _
    $region7: #{tpu_custom_call.1} parent=1 // pred_check_branch
      %14 = sbr.rel (0) target = $region9
    $region8: #{tpu_custom_call.1} parent=1 // pred_region
      _
    $region9: #{tpu_custom_call.1} parent=1 // pred_fallthru
      _
    // Predicated region
    $region10: #{tpu_custom_call.1} parent=1 // pred_check
      _
    $region11: #{tpu_custom_call.1} parent=1 // pred_check_branch
      %16 = sbr.rel (0) target = $region13
    $region12: #{tpu_custom_call.1} parent=1 // pred_region
      _
    $region13: #{tpu_custom_call.1} parent=1 // pred_fallthru
      _
    // Predicated region
    $region14: #{tpu_custom_call.1} parent=1 // pred_check
      _
    $region15: #{tpu_custom_call.1} parent=1 // pred_check_branch
      %18 = sbr.rel (0) target = $region17
    $region16: #{tpu_custom_call.1} parent=1 // pred_region
      _
    $region17: #{tpu_custom_call.1} parent=1 // pred_fallthru
      _
    // Predicated region
    $region18: #{tpu_custom_call.1} parent=1 // pred_check
      _
    $region19: #{tpu_custom_call.1} parent=1 // pred_check_branch
      %20 = sbr.rel (0) target = $region21
    $region20: #{tpu_custom_call.1} parent=1 // pred_region
      _
    $region21: #{tpu_custom_call.1} parent=1 // pred_fallthru
      _
    %v21 = vld [vmem:[%s0] sm:$0xff]
    %v22 = vld [vmem:[%s0 + $0x8] sm:$0xff]
    %v23 = vld [vmem:[%s0 + $0x10] sm:$0xff]
    %v24 = vld [vmem:[%s0 + $0x18] sm:$0xff]
    %v25 = vld [vmem:[%s0 + $0x20] sm:$0xff]
    %v26 = vld [vmem:[%s0 + $0x28] sm:$0xff]
    %v27 = vld [vmem:[%s0 + $0x30] sm:$0xff]
    %v28 = vld [vmem:[%s0 + $0x38] sm:$0xff]
    %v29 = vld [vmem:[%s0 + $0x40] sm:$0xff]
    %v30 = vld [vmem:[%s0 + $0x48] sm:$0xff]
    %v31 = vld [vmem:[%s0 + $0x50] sm:$0xff]
    %v32 = vld [vmem:[%s0 + $0x58] sm:$0xff]
    %v33 = vld [vmem:[%s0 + $0x60] sm:$0xff]
    %v34 = vld [vmem:[%s0 + $0x68] sm:$0xff]
    %v35 = vld [vmem:[%s0 + $0x70] sm:$0xff]
    %v36 = vld [vmem:[%s0 + $0x78] sm:$0xff]
    %v37 = vld [vmem:[%s2] sm:$0xff]
    %v38 = vld [vmem:[%s2 + $0x8] sm:$0xff]
    %v39 = vld [vmem:[%s2 + $0x10] sm:$0xff]
    %v40 = vld [vmem:[%s2 + $0x18] sm:$0xff]
    %v41 = vld [vmem:[%s1] sm:$0xff]
    %v42 = vld [vmem:[%s1 + $0x8] sm:$0xff]
    %v43 = vld [vmem:[%s1 + $0x10] sm:$0xff]
    %v44 = vld [vmem:[%s1 + $0x18] sm:$0xff]
    %v45 = vld [vmem:[%s1 + $0x20] sm:$0xff]
    %v46 = vld [vmem:[%s1 + $0x28] sm:$0xff]
    %v47 = vld [vmem:[%s1 + $0x30] sm:$0xff]
    %v48 = vld [vmem:[%s1 + $0x38] sm:$0xff]
    %v49 = vld [vmem:[%s1 + $0x40] sm:$0xff]
    %v50 = vld [vmem:[%s1 + $0x48] sm:$0xff]
    %v51 = vld [vmem:[%s1 + $0x50] sm:$0xff]
    %v52 = vld [vmem:[%s1 + $0x58] sm:$0xff]
    %v53 = vld [vmem:[%s1 + $0x60] sm:$0xff]
    %v54 = vld [vmem:[%s1 + $0x68] sm:$0xff]
    %v55 = vld [vmem:[%s1 + $0x70] sm:$0xff]
    %v56 = vld [vmem:[%s1 + $0x78] sm:$0xff]
    %v57 = vld [vmem:[%s3] sm:$0xff]
    %v58 = vld [vmem:[%s3 + $0x8] sm:$0xff]
    %v59 = vld [vmem:[%s3 + $0x10] sm:$0xff]
    %v60 = vld [vmem:[%s3 + $0x18] sm:$0xff]
    %vm61 = vcmask 261120
    %v63 = vsel %vm61, %v41, 0
    %v66 = vsel %vm61, %v42, 0
    %v69 = vsel %vm61, %v43, 0
    %v72 = vsel %vm61, %v44, 0
    %v75 = vsel %vm61, %v45, 0
    %v78 = vsel %vm61, %v46, 0
    %v81 = vsel %vm61, %v47, 0
    %v84 = vsel %vm61, %v48, 0
    %v87 = vsel %vm61, %v49, 0
    %v90 = vsel %vm61, %v50, 0
    %v93 = vsel %vm61, %v51, 0
    %v96 = vsel %vm61, %v52, 0
    %v99 = vsel %vm61, %v53, 0
    %v102 = vsel %vm61, %v54, 0
    %v105 = vsel %vm61, %v55, 0
    %v108 = vsel %vm61, %v56, 0
    %110 = vmatprep.subr.mxu0 0.0
    %111 = vmatpush1.msra.mxu0 0.0
    %112 = vmatprep.subr.mxu0 0.0
    %113 = vmatpush1.msra.mxu0 0.0
    %114 = vmatprep.subr.mxu0 0.0
    %115 = vmatpush1.msra.mxu0 0.0
    %116 = vmatprep.subr.mxu0 0.0
    %117 = vmatpush1.msra.mxu0 0.0
    %118 = vmatprep.subr.mxu0 0.0
    %119 = vmatpush1.msra.mxu0 0.0
    %120 = vmatprep.subr.mxu0 0.0
    %121 = vmatpush1.msra.mxu0 0.0
    %122 = vmatprep.subr.mxu0 0.0
    %123 = vmatpush1.msra.mxu0 0.0
    %124 = vmatprep.subr.mxu0 0.0
    %125 = vmatpush1.msra.mxu0 0.0
    %126 = vmatprep.subr.mxu0 0.0
    %127 = vmatpush1.msra.mxu0 0.0
    %128 = vmatprep.subr.mxu0 0.0
    %129 = vmatpush1.msra.mxu0 0.0
    %130 = vmatprep.subr.mxu0 0.0
    %131 = vmatpush1.msra.mxu0 0.0
    %132 = vmatprep.subr.mxu0 0.0
    %133 = vmatpush1.msra.mxu0 0.0
    %134 = vmatprep.subr.mxu0 0.0
    %135 = vmatpush1.msra.mxu0 %v60
    %136 = vmatprep.subr.mxu0 0.0
    %137 = vmatpush1.msra.mxu0 %v59
    %138 = vmatprep.subr.mxu0 0.0
    %139 = vmatpush1.msra.mxu0 %v58
    %140 = vmatprep.subr.mxu0 0.0
    %141 = vmatpush1.msra.mxu0 %v57
    %142 = vmatprep.subr.mxu0 0.0
    %143 = vmatpush2.msra.mxu0 0.0
    %144 = vmatprep.subr.mxu0 0.0
    %145 = vmatpush2.msra.mxu0 0.0
    %146 = vmatprep.subr.mxu0 0.0
    %147 = vmatpush2.msra.mxu0 0.0
    %148 = vmatprep.subr.mxu0 0.0
    %149 = vmatpush2.msra.mxu0 0.0
    %150 = vmatprep.subr.mxu0 0.0
    %151 = vmatpush2.msra.mxu0 0.0
    %152 = vmatprep.subr.mxu0 0.0
    %153 = vmatpush2.msra.mxu0 0.0
    %154 = vmatprep.subr.mxu0 0.0
    %155 = vmatpush2.msra.mxu0 0.0
    %156 = vmatprep.subr.mxu0 0.0
    %157 = vmatpush2.msra.mxu0 0.0
    %158 = vmatprep.subr.mxu0 0.0
    %159 = vmatpush2.msra.mxu0 0.0
    %160 = vmatprep.subr.mxu0 0.0
    %161 = vmatpush2.msra.mxu0 0.0
    %162 = vmatprep.subr.mxu0 0.0
    %163 = vmatpush2.msra.mxu0 0.0
    %164 = vmatprep.subr.mxu0 0.0
    %165 = vmatpush2.msra.mxu0 0.0
    %166 = vmatprep.subr.mxu0 0.0
    %167 = vmatpush2.msra.mxu0 0.0
    %168 = vmatprep.subr.mxu0 0.0
    %169 = vmatpush2.msra.mxu0 0.0
    %170 = vmatprep.subr.mxu0 0.0
    %171 = vmatpush2.msra.mxu0 0.0
    %172 = vmatprep.subr.mxu0 0.0
    %173 = vmatpush2.msra.mxu0 0.0
    %174 = vmatprep.mubr.f32.mxu0 0.0
    %175 = vmatmul.mubr.f32.gmra.mxu0 %v63
    %v176 = vpop.f32.mrf.mxu0
    %v177 = vadd.f32 0.0, %v176
    %v178 = vpop.f32.mrf.mxu0
    %179 = vmatprep.mubr.f32.mxu0 0.0
    %180 = vmatmul.mubr.f32.gmra.mxu0 %v66
    %v181 = vpop.f32.mrf.mxu0
    %v182 = vadd.f32 0.0, %v181
    %v183 = vpop.f32.mrf.mxu0
    %184 = vmatprep.mubr.f32.mxu0 0.0
    %185 = vmatmul.mubr.f32.gmra.mxu0 %v69
    %v186 = vpop.f32.mrf.mxu0
    %v187 = vadd.f32 0.0, %v186
    %v188 = vpop.f32.mrf.mxu0
    %189 = vmatprep.mubr.f32.mxu0 0.0
    %190 = vmatmul.mubr.f32.gmra.mxu0 %v72
    %v191 = vpop.f32.mrf.mxu0
    %v192 = vadd.f32 0.0, %v191
    %v193 = vpop.f32.mrf.mxu0
    %194 = vmatprep.mubr.f32.mxu0 0.0
    %195 = vmatmul.mubr.f32.gmra.mxu0 %v75
    %v196 = vpop.f32.mrf.mxu0
    %v197 = vadd.f32 0.0, %v196
    %v198 = vpop.f32.mrf.mxu0
    %199 = vmatprep.mubr.f32.mxu0 0.0
    %200 = vmatmul.mubr.f32.gmra.mxu0 %v78
    %v201 = vpop.f32.mrf.mxu0
    %v202 = vadd.f32 0.0, %v201
    %v203 = vpop.f32.mrf.mxu0
    %204 = vmatprep.mubr.f32.mxu0 0.0
    %205 = vmatmul.mubr.f32.gmra.mxu0 %v81
    %v206 = vpop.f32.mrf.mxu0
    %v207 = vadd.f32 0.0, %v206
    %v208 = vpop.f32.mrf.mxu0
    %209 = vmatprep.mubr.f32.mxu0 0.0
    %210 = vmatmul.mubr.f32.gmra.mxu0 %v84
    %v211 = vpop.f32.mrf.mxu0
    %v212 = vadd.f32 0.0, %v211
    %v213 = vpop.f32.mrf.mxu0
    %214 = vmatprep.mubr.f32.mxu0 0.0
    %215 = vmatmul.mubr.f32.gmra.mxu0 %v87
    %v216 = vpop.f32.mrf.mxu0
    %v217 = vadd.f32 0.0, %v216
    %v218 = vpop.f32.mrf.mxu0
    %219 = vmatprep.mubr.f32.mxu0 0.0
    %220 = vmatmul.mubr.f32.gmra.mxu0 %v90
    %v221 = vpop.f32.mrf.mxu0
    %v222 = vadd.f32 0.0, %v221
    %v223 = vpop.f32.mrf.mxu0
    %224 = vmatprep.mubr.f32.mxu0 0.0
    %225 = vmatmul.mubr.f32.gmra.mxu0 %v93
    %v226 = vpop.f32.mrf.mxu0
    %v227 = vadd.f32 0.0, %v226
    %v228 = vpop.f32.mrf.mxu0
    %229 = vmatprep.mubr.f32.mxu0 0.0
    %230 = vmatmul.mubr.f32.gmra.mxu0 %v96
    %v231 = vpop.f32.mrf.mxu0
    %v232 = vadd.f32 0.0, %v231
    %v233 = vpop.f32.mrf.mxu0
    %234 = vmatprep.mubr.f32.mxu0 0.0
    %235 = vmatmul.mubr.f32.gmra.mxu0 %v99
    %v236 = vpop.f32.mrf.mxu0
    %v237 = vadd.f32 0.0, %v236
    %v238 = vpop.f32.mrf.mxu0
    %239 = vmatprep.mubr.f32.mxu0 0.0
    %240 = vmatmul.mubr.f32.gmra.mxu0 %v102
    %v241 = vpop.f32.mrf.mxu0
    %v242 = vadd.f32 0.0, %v241
    %v243 = vpop.f32.mrf.mxu0
    %244 = vmatprep.mubr.f32.mxu0 0.0
    %245 = vmatmul.mubr.f32.gmra.mxu0 %v105
    %v246 = vpop.f32.mrf.mxu0
    %v247 = vadd.f32 0.0, %v246
    %v248 = vpop.f32.mrf.mxu0
    %249 = vmatprep.mubr.f32.mxu0 0.0
    %250 = vmatmul.mubr.f32.gmra.mxu0 %v108
    %v251 = vpop.f32.mrf.mxu0
    %v252 = vadd.f32 0.0, %v251
    %v253 = vpop.f32.mrf.mxu0
    %254 = vdwg.mxu0
    %v256 = vsel %vm61, %v21, 0
    %v259 = vsel %vm61, %v22, 0
    %v262 = vsel %vm61, %v23, 0
    %v265 = vsel %vm61, %v24, 0
    %v268 = vsel %vm61, %v25, 0
    %v271 = vsel %vm61, %v26, 0
    %v274 = vsel %vm61, %v27, 0
    %v277 = vsel %vm61, %v28, 0
    %v280 = vsel %vm61, %v29, 0
    %v283 = vsel %vm61, %v30, 0
    %v286 = vsel %vm61, %v31, 0
    %v289 = vsel %vm61, %v32, 0
    %v292 = vsel %vm61, %v33, 0
    %v295 = vsel %vm61, %v34, 0
    %v298 = vsel %vm61, %v35, 0
    %v301 = vsel %vm61, %v36, 0
    %303 = vmatprep.subr.mxu0 0.0
    %304 = vmatpush1.msra.mxu0 0.0
    %305 = vmatprep.subr.mxu0 0.0
    %306 = vmatpush1.msra.mxu0 0.0
    %307 = vmatprep.subr.mxu0 0.0
    %308 = vmatpush1.msra.mxu0 0.0
    %309 = vmatprep.subr.mxu0 0.0
    %310 = vmatpush1.msra.mxu0 0.0
    %311 = vmatprep.subr.mxu0 0.0
    %312 = vmatpush1.msra.mxu0 0.0
    %313 = vmatprep.subr.mxu0 0.0
    %314 = vmatpush1.msra.mxu0 0.0
    %315 = vmatprep.subr.mxu0 0.0
    %316 = vmatpush1.msra.mxu0 0.0
    %317 = vmatprep.subr.mxu0 0.0
    %318 = vmatpush1.msra.mxu0 0.0
    %319 = vmatprep.subr.mxu0 0.0
    %320 = vmatpush1.msra.mxu0 0.0
    %321 = vmatprep.subr.mxu0 0.0
    %322 = vmatpush1.msra.mxu0 0.0
    %323 = vmatprep.subr.mxu0 0.0
    %324 = vmatpush1.msra.mxu0 0.0
    %325 = vmatprep.subr.mxu0 0.0
    %326 = vmatpush1.msra.mxu0 0.0
    %327 = vmatprep.subr.mxu0 0.0
    %328 = vmatpush1.msra.mxu0 %v40
    %329 = vmatprep.subr.mxu0 0.0
    %330 = vmatpush1.msra.mxu0 %v39
    %331 = vmatprep.subr.mxu0 0.0
    %332 = vmatpush1.msra.mxu0 %v38
    %333 = vmatprep.subr.mxu0 0.0
    %334 = vmatpush1.msra.mxu0 %v37
    %335 = vmatprep.subr.mxu0 0.0
    %336 = vmatpush2.msra.mxu0 0.0
    %337 = vmatprep.subr.mxu0 0.0
    %338 = vmatpush2.msra.mxu0 0.0
    %339 = vmatprep.subr.mxu0 0.0
    %340 = vmatpush2.msra.mxu0 0.0
    %341 = vmatprep.subr.mxu0 0.0
    %342 = vmatpush2.msra.mxu0 0.0
    %343 = vmatprep.subr.mxu0 0.0
    %344 = vmatpush2.msra.mxu0 0.0
    %345 = vmatprep.subr.mxu0 0.0
    %346 = vmatpush2.msra.mxu0 0.0
    %347 = vmatprep.subr.mxu0 0.0
    %348 = vmatpush2.msra.mxu0 0.0
    %349 = vmatprep.subr.mxu0 0.0
    %350 = vmatpush2.msra.mxu0 0.0
    %351 = vmatprep.subr.mxu0 0.0
    %352 = vmatpush2.msra.mxu0 0.0
    %353 = vmatprep.subr.mxu0 0.0
    %354 = vmatpush2.msra.mxu0 0.0
    %355 = vmatprep.subr.mxu0 0.0
    %356 = vmatpush2.msra.mxu0 0.0
    %357 = vmatprep.subr.mxu0 0.0
    %358 = vmatpush2.msra.mxu0 0.0
    %359 = vmatprep.subr.mxu0 0.0
    %360 = vmatpush2.msra.mxu0 0.0
    %361 = vmatprep.subr.mxu0 0.0
    %362 = vmatpush2.msra.mxu0 0.0
    %363 = vmatprep.subr.mxu0 0.0
    %364 = vmatpush2.msra.mxu0 0.0
    %365 = vmatprep.subr.mxu0 0.0
    %366 = vmatpush2.msra.mxu0 0.0
    %367 = vmatprep.mubr.f32.mxu0 0.0
    %368 = vmatmul.mubr.f32.gmra.mxu0 %v256
    %v369 = vpop.f32.mrf.mxu0
    %v370 = vadd.f32 %v177, %v369
    %v371 = vpop.f32.mrf.mxu0
    %372 = vmatprep.mubr.f32.mxu0 0.0
    %373 = vmatmul.mubr.f32.gmra.mxu0 %v259
    %v374 = vpop.f32.mrf.mxu0
    %v375 = vadd.f32 %v182, %v374
    %v376 = vpop.f32.mrf.mxu0
    %377 = vmatprep.mubr.f32.mxu0 0.0
    %378 = vmatmul.mubr.f32.gmra.mxu0 %v262
    %v379 = vpop.f32.mrf.mxu0
    %v380 = vadd.f32 %v187, %v379
    %v381 = vpop.f32.mrf.mxu0
    %382 = vmatprep.mubr.f32.mxu0 0.0
    %383 = vmatmul.mubr.f32.gmra.mxu0 %v265
    %v384 = vpop.f32.mrf.mxu0
    %v385 = vadd.f32 %v192, %v384
    %v386 = vpop.f32.mrf.mxu0
    %387 = vmatprep.mubr.f32.mxu0 0.0
    %388 = vmatmul.mubr.f32.gmra.mxu0 %v268
    %v389 = vpop.f32.mrf.mxu0
    %v390 = vadd.f32 %v197, %v389
    %v391 = vpop.f32.mrf.mxu0
    %392 = vmatprep.mubr.f32.mxu0 0.0
    %393 = vmatmul.mubr.f32.gmra.mxu0 %v271
    %v394 = vpop.f32.mrf.mxu0
    %v395 = vadd.f32 %v202, %v394
    %v396 = vpop.f32.mrf.mxu0
    %397 = vmatprep.mubr.f32.mxu0 0.0
    %398 = vmatmul.mubr.f32.gmra.mxu0 %v274
    %v399 = vpop.f32.mrf.mxu0
    %v400 = vadd.f32 %v207, %v399
    %v401 = vpop.f32.mrf.mxu0
    %402 = vmatprep.mubr.f32.mxu0 0.0
    %403 = vmatmul.mubr.f32.gmra.mxu0 %v277
    %v404 = vpop.f32.mrf.mxu0
    %v405 = vadd.f32 %v212, %v404
    %v406 = vpop.f32.mrf.mxu0
    %407 = vmatprep.mubr.f32.mxu0 0.0
    %408 = vmatmul.mubr.f32.gmra.mxu0 %v280
    %v409 = vpop.f32.mrf.mxu0
    %v410 = vadd.f32 %v217, %v409
    %v411 = vpop.f32.mrf.mxu0
    %412 = vmatprep.mubr.f32.mxu0 0.0
    %413 = vmatmul.mubr.f32.gmra.mxu0 %v283
    %v414 = vpop.f32.mrf.mxu0
    %v415 = vadd.f32 %v222, %v414
    %v416 = vpop.f32.mrf.mxu0
    %417 = vmatprep.mubr.f32.mxu0 0.0
    %418 = vmatmul.mubr.f32.gmra.mxu0 %v286
    %v419 = vpop.f32.mrf.mxu0
    %v420 = vadd.f32 %v227, %v419
    %v421 = vpop.f32.mrf.mxu0
    %422 = vmatprep.mubr.f32.mxu0 0.0
    %423 = vmatmul.mubr.f32.gmra.mxu0 %v289
    %v424 = vpop.f32.mrf.mxu0
    %v425 = vadd.f32 %v232, %v424
    %v426 = vpop.f32.mrf.mxu0
    %427 = vmatprep.mubr.f32.mxu0 0.0
    %428 = vmatmul.mubr.f32.gmra.mxu0 %v292
    %v429 = vpop.f32.mrf.mxu0
    %v430 = vadd.f32 %v237, %v429
    %v431 = vpop.f32.mrf.mxu0
    %432 = vmatprep.mubr.f32.mxu0 0.0
    %433 = vmatmul.mubr.f32.gmra.mxu0 %v295
    %v434 = vpop.f32.mrf.mxu0
    %v435 = vadd.f32 %v242, %v434
    %v436 = vpop.f32.mrf.mxu0
    %437 = vmatprep.mubr.f32.mxu0 0.0
    %438 = vmatmul.mubr.f32.gmra.mxu0 %v298
    %v439 = vpop.f32.mrf.mxu0
    %v440 = vadd.f32 %v247, %v439
    %v441 = vpop.f32.mrf.mxu0
    %442 = vmatprep.mubr.f32.mxu0 0.0
    %443 = vmatmul.mubr.f32.gmra.mxu0 %v301
    %v444 = vpop.f32.mrf.mxu0
    %v445 = vadd.f32 %v252, %v444
    %v446 = vpop.f32.mrf.mxu0
    %447 = vdwg.mxu0
    %v448 = vld [vmem:[%s4] sm:$0x1]
    %v449 = vlaneseq
    %v450 = vshrl.u32 %v449, 7
    %v451 = vsub.s32 0, %v450
    %v452 = vrot.slane %v448, %v451
    %v453 = vadd.f32 %v370, %v452
    %v454 = vadd.f32 %v375, %v452
    %v455 = vadd.f32 %v380, %v452
    %v456 = vadd.f32 %v385, %v452
    %v457 = vadd.f32 %v390, %v452
    %v458 = vadd.f32 %v395, %v452
    %v459 = vadd.f32 %v400, %v452
    %v460 = vadd.f32 %v405, %v452
    %v461 = vadd.f32 %v410, %v452
    %v462 = vadd.f32 %v415, %v452
    %v463 = vadd.f32 %v420, %v452
    %v464 = vadd.f32 %v425, %v452
    %v465 = vadd.f32 %v430, %v452
    %v466 = vadd.f32 %v435, %v452
    %v467 = vadd.f32 %v440, %v452
    %v468 = vadd.f32 %v445, %v452
    %v469 = vmax.f32 %v453, 0.0
    %v470 = vmax.f32 %v454, 0.0
    %v471 = vmax.f32 %v455, 0.0
    %v472 = vmax.f32 %v456, 0.0
    %v473 = vmax.f32 %v457, 0.0
    %v474 = vmax.f32 %v458, 0.0
    %v475 = vmax.f32 %v459, 0.0
    %v476 = vmax.f32 %v460, 0.0
    %v477 = vmax.f32 %v461, 0.0
    %v478 = vmax.f32 %v462, 0.0
    %v479 = vmax.f32 %v463, 0.0
    %v480 = vmax.f32 %v464, 0.0
    %v481 = vmax.f32 %v465, 0.0
    %v482 = vmax.f32 %v466, 0.0
    %v483 = vmax.f32 %v467, 0.0
    %v484 = vmax.f32 %v468, 0.0
    %v485 = vld [vmem:[%s4 + $0x1] sm:$0x1]
    %v486 = vld [vmem:[%s4 + $0x2] sm:$0x1]
    %488 = vset.pattern.permute.xlu0 0
    %489 = vperm.xlu0 %488, %v486
    %v490 = vpop.permute.xlu0 %489
    %v493 = vsel %vm61, %v485, 0
    %v496 = vsel %vm61, %v469, 0
    %v499 = vsel %vm61, %v470, 0
    %v502 = vsel %vm61, %v471, 0
    %v505 = vsel %vm61, %v472, 0
    %v508 = vsel %vm61, %v473, 0
    %v511 = vsel %vm61, %v474, 0
    %v514 = vsel %vm61, %v475, 0
    %v517 = vsel %vm61, %v476, 0
    %v520 = vsel %vm61, %v477, 0
    %v523 = vsel %vm61, %v478, 0
    %v526 = vsel %vm61, %v479, 0
    %v529 = vsel %vm61, %v480, 0
    %v532 = vsel %vm61, %v481, 0
    %v535 = vsel %vm61, %v482, 0
    %v538 = vsel %vm61, %v483, 0
    %v541 = vsel %vm61, %v484, 0
    %543 = vmatprep.subr.mxu0 0.0
    %544 = vmatpush1.xpose.msra.mxu0 %v541
    %545 = vmatprep.subr.mxu0 0.0
    %546 = vmatpush1.xpose.msra.mxu0 %v538
    %547 = vmatprep.subr.mxu0 0.0
    %548 = vmatpush1.xpose.msra.mxu0 %v535
    %549 = vmatprep.subr.mxu0 0.0
    %550 = vmatpush1.xpose.msra.mxu0 %v532
    %551 = vmatprep.subr.mxu0 0.0
    %552 = vmatpush1.xpose.msra.mxu0 %v529
    %553 = vmatprep.subr.mxu0 0.0
    %554 = vmatpush1.xpose.msra.mxu0 %v526
    %555 = vmatprep.subr.mxu0 0.0
    %556 = vmatpush1.xpose.msra.mxu0 %v523
    %557 = vmatprep.subr.mxu0 0.0
    %558 = vmatpush1.xpose.msra.mxu0 %v520
    %559 = vmatprep.subr.mxu0 0.0
    %560 = vmatpush1.xpose.msra.mxu0 %v517
    %561 = vmatprep.subr.mxu0 0.0
    %562 = vmatpush1.xpose.msra.mxu0 %v514
    %563 = vmatprep.subr.mxu0 0.0
    %564 = vmatpush1.xpose.msra.mxu0 %v511
    %565 = vmatprep.subr.mxu0 0.0
    %566 = vmatpush1.xpose.msra.mxu0 %v508
    %567 = vmatprep.subr.mxu0 0.0
    %568 = vmatpush1.xpose.msra.mxu0 %v505
    %569 = vmatprep.subr.mxu0 0.0
    %570 = vmatpush1.xpose.msra.mxu0 %v502
    %571 = vmatprep.subr.mxu0 0.0
    %572 = vmatpush1.xpose.msra.mxu0 %v499
    %573 = vmatprep.subr.mxu0 0.0
    %574 = vmatpush1.xpose.msra.mxu0 %v496
    %575 = vmatprep.subr.mxu0 0.0
    %576 = vmatpush2.xpose.msra.mxu0 0.0
    %577 = vmatprep.subr.mxu0 0.0
    %578 = vmatpush2.xpose.msra.mxu0 0.0
    %579 = vmatprep.subr.mxu0 0.0
    %580 = vmatpush2.xpose.msra.mxu0 0.0
    %581 = vmatprep.subr.mxu0 0.0
    %582 = vmatpush2.xpose.msra.mxu0 0.0
    %583 = vmatprep.subr.mxu0 0.0
    %584 = vmatpush2.xpose.msra.mxu0 0.0
    %585 = vmatprep.subr.mxu0 0.0
    %586 = vmatpush2.xpose.msra.mxu0 0.0
    %587 = vmatprep.subr.mxu0 0.0
    %588 = vmatpush2.xpose.msra.mxu0 0.0
    %589 = vmatprep.subr.mxu0 0.0
    %590 = vmatpush2.xpose.msra.mxu0 0.0
    %591 = vmatprep.subr.mxu0 0.0
    %592 = vmatpush2.xpose.msra.mxu0 0.0
    %593 = vmatprep.subr.mxu0 0.0
    %594 = vmatpush2.xpose.msra.mxu0 0.0
    %595 = vmatprep.subr.mxu0 0.0
    %596 = vmatpush2.xpose.msra.mxu0 0.0
    %597 = vmatprep.subr.mxu0 0.0
    %598 = vmatpush2.xpose.msra.mxu0 0.0
    %599 = vmatprep.subr.mxu0 0.0
    %600 = vmatpush2.xpose.msra.mxu0 0.0
    %601 = vmatprep.subr.mxu0 0.0
    %602 = vmatpush2.xpose.msra.mxu0 0.0
    %603 = vmatprep.subr.mxu0 0.0
    %604 = vmatpush2.xpose.msra.mxu0 0.0
    %605 = vmatprep.subr.mxu0 0.0
    %606 = vmatpush2.xpose.msra.mxu0 0.0
    %607 = vmatprep.mubr.f32.mxu0 0.0
    %608 = vmatmul.mubr.f32.gmra.mxu0 %v493
    %v609 = vpop.f32.mrf.mxu0
    %v610 = vadd.f32 %v490, %v609
    %v611 = vpop.f32.mrf.mxu0
    %612 = vdwg.mxu0
    %613 = vst [vmem:[#allocation2] sm:$0x1] %v610
    // Predicated region
    $region22: #{tpu_custom_call.1} parent=1 // pred_check
      _
    $region23: #{tpu_custom_call.1} parent=1 // pred_check_branch
      %615 = sbr.rel (0) target = $region25
    $region24: #{tpu_custom_call.1} parent=1 // pred_region
      %s617 = ssub.s32 16, 16
      %618 = vsyncadd [#allocation3], %s617
      %s620 = sshll.u32 [#allocation2], 4
      %s621 = int_to_ptr.vmem [resolvable:$true] %s620
      %623 = dma.vmem_to_hbm [thread:$0]  %s621, 16, %s5, [#allocation3]
    $region25: #{tpu_custom_call.1} parent=1 // pred_fallthru
      _
    // Predicated region
    $region26: #{tpu_custom_call.1} parent=1 // pred_check
      _
    $region27: #{tpu_custom_call.1} parent=1 // pred_check_branch
      %625 = sbr.rel (0) target = $region29
    $region28: #{tpu_custom_call.1} parent=1 // pred_region
      %626 = dma.done [#allocation3], 16
    $region29: #{tpu_custom_call.1} parent=1 // pred_fallthru
      _
    %627 = vsyncpa [#allocation3], 1

</llo_original>
